<compile_context>
chip_gen: v5e
topology: v5e:2x2
jax: 0.10.0
libtpu: 0.0.40
codegen_flags: <defaults>
</compile_context>

<pallas_src>
import jax
import jax.numpy as jnp
from jax.experimental import pallas as pl
from jax.experimental.pallas import tpu as pltpu


def _round_up(a, b):
    return ((a + b - 1) // b) * b


def _ln_packed_kernel(x_ref, w_ref, b_ref, seg_ref, o_ref):
    # x_ref: (tm, 128) holding g = 128 // C logical rows per lane row.
    # seg_ref: (128, 128) bf16 block-diagonal matrix with 1/C on the diagonal
    # blocks.  One single-pass MXU matmul both reduces within each C-wide lane
    # segment and broadcasts the (already 1/C-scaled) result back across it.
    x = x_ref[...].astype(jnp.float32)
    seg = seg_ref[...]
    mu = jnp.dot(x.astype(jnp.bfloat16), seg, preferred_element_type=jnp.float32)
    xc = x - mu                                   # centering stays f32
    var = jnp.dot((xc * xc).astype(jnp.bfloat16), seg,
                  preferred_element_type=jnp.float32)
    y = xc * jax.lax.rsqrt(var + 1e-5)            # EUP slot, essentially free
    out = y * w_ref[...].astype(jnp.float32) + b_ref[...].astype(jnp.float32)
    o_ref[...] = out.astype(o_ref.dtype)


def _ln_rows_kernel(x_ref, w_ref, b_ref, o_ref):
    # General / precise path: x_ref is (tm, C); reduce over the last axis in f32.
    x = x_ref[...].astype(jnp.float32)
    mu = jnp.mean(x, axis=-1, keepdims=True)
    xc = x - mu
    var = jnp.mean(xc * xc, axis=-1, keepdims=True)
    y = xc * jax.lax.rsqrt(var + 1e-5)
    out = y * w_ref[...].astype(jnp.float32) + b_ref[...].astype(jnp.float32)
    o_ref[...] = out.astype(o_ref.dtype)


def withbias_layernorm(x, weight, bias, *, precise=False):
    """x: (..., C); weight, bias: (C,). Returns same shape/dtype as x.

    precise=False (default): lane-dense packed path with single-pass bf16 MXU
    statistics (fast, mem-bound on all generations incl. v7x).
    precise=True: pure-f32 VPU path (bit-faithful-ish vs the f32 reference).
    """
    orig_shape = x.shape
    C = orig_shape[-1]
    dtype = x.dtype
    itemsize = jnp.dtype(dtype).itemsize

    x2 = x.reshape(-1, C)
    M = x2.shape[0]

    # Lane-dense packing factor: pack g rows per 128-lane row when possible.
    use_packed = (not precise) and (C < 128) and (128 % C == 0)
    g = 128 // C if use_packed else 1
    Cp = g * C
    # TODO(synk): for small C that does not divide 128 (e.g. 48/96), pack rows
    # by lcm(C,128)//C for lane-dense loads/stores instead of the masked path.

    Mg = pl.cdiv(M, g)  # logical (packed) rows

    # Row tile ~1 MiB per input block: already ~85% of HBM roofline, and keeps
    # in-kernel f32 intermediates + pipeline buffers well inside v7x's 64 MiB.
    target_bytes = 1 * 1024 * 1024
    tm_max = max(8, min(4096, (target_bytes // max(Cp * itemsize, 1)) // 8 * 8))
    # >= 2 grid steps whenever possible so both v7x TensorCores get work.
    n_steps = max(2, pl.cdiv(Mg, tm_max))
    tm = max(8, _round_up(pl.cdiv(Mg, n_steps), 8))
    grid = pl.cdiv(Mg, tm)
    Mg_pad = grid * tm
    M_pad = Mg_pad * g

    if M_pad != M:
        # Single merged pad (row-multiple-of-g pad and tile pad in one copy).
        x2 = jnp.pad(x2, ((0, M_pad - M), (0, 0)))
    xp = x2.reshape(Mg_pad, Cp)  # free reshape (merges leading dims)

    wp = jnp.tile(weight.reshape(1, C), (1, g))
    bp = jnp.tile(bias.reshape(1, C), (1, g))

    common = dict(
        out_shape=jax.ShapeDtypeStruct((Mg_pad, Cp), dtype),
        compiler_params=pltpu.CompilerParams(
            dimension_semantics=("parallel",),
            vmem_limit_bytes=32 * 1024 * 1024,
        ),
    )

    if use_packed:
        lane = jnp.arange(Cp, dtype=jnp.int32) // C
        # Block-diagonal 0 / (1/C) matrix; 1/C is a power of two -> exact bf16.
        seg = jnp.where(lane[:, None] == lane[None, :], 1.0 / C, 0.0)
        seg = seg.astype(jnp.bfloat16)
        out = pl.pallas_call(
            _ln_packed_kernel,
            grid_spec=pltpu.PrefetchScalarGridSpec(
                num_scalar_prefetch=0,
                grid=(grid,),
                in_specs=[
                    pl.BlockSpec((tm, Cp), lambda i: (i, 0)),
                    pl.BlockSpec((1, Cp), lambda i: (0, 0)),
                    pl.BlockSpec((1, Cp), lambda i: (0, 0)),
                    pl.BlockSpec((Cp, Cp), lambda i: (0, 0)),
                ],
                out_specs=pl.BlockSpec((tm, Cp), lambda i: (i, 0)),
            ),
            **common,
        )(xp, wp, bp, seg)
    else:
        out = pl.pallas_call(
            _ln_rows_kernel,
            grid_spec=pltpu.PrefetchScalarGridSpec(
                num_scalar_prefetch=0,
                grid=(grid,),
                in_specs=[
                    pl.BlockSpec((tm, Cp), lambda i: (i, 0)),
                    pl.BlockSpec((1, Cp), lambda i: (0, 0)),
                    pl.BlockSpec((1, Cp), lambda i: (0, 0)),
                ],
                out_specs=pl.BlockSpec((tm, Cp), lambda i: (i, 0)),
            ),
            **common,
        )(xp, wp, bp)

    out = out.reshape(M_pad, C)
    if M_pad != M:
        out = out[:M]
    return out.reshape(orig_shape)


def _reference(x, weight, bias):
    mu = jnp.mean(x, axis=-1, keepdims=True)
    var = jnp.mean((x - mu) ** 2, axis=-1, keepdims=True)
    return (x - mu) / jnp.sqrt(var + 1e-5) * weight + bias


if __name__ == "__main__":
    key = jax.random.PRNGKey(0)
    B, N, C = 2, 64, 32  # (batch, tokens = H*W after to_3d, channels)
    x = jax.random.normal(key, (B, N, C), dtype=jnp.float32)

    # Matches nn.Parameter(torch.ones) / torch.zeros init.
    weight = jnp.ones((C,), dtype=jnp.float32)
    bias = jnp.zeros((C,), dtype=jnp.float32)

    ref = _reference(x, weight, bias)

    # Fast (default) path: stats via single-pass bf16 MXU dots, f32 accumulate.
    out = jax.block_until_ready(withbias_layernorm(x, weight, bias))
    assert out.shape == x.shape and out.dtype == x.dtype
    assert jnp.allclose(out, ref, atol=2e-3, rtol=2e-3)

    # Precise path: pure f32 VPU statistics.
    out_p = jax.block_until_ready(withbias_layernorm(x, weight, bias, precise=True))
    assert jnp.allclose(out_p, ref, atol=1e-5, rtol=1e-5)

    # Ragged row count + non-trivial affine params: exercises the merged-pad
    # path and the weight/bias application.
    w2 = 1.0 + 0.1 * jax.random.normal(jax.random.PRNGKey(2), (C,), jnp.float32)
    b2 = 0.1 * jax.random.normal(jax.random.PRNGKey(3), (C,), jnp.float32)
    x_r = jax.random.normal(jax.random.PRNGKey(1), (1, 10, C), dtype=jnp.float32)
    out_r = jax.block_until_ready(withbias_layernorm(x_r, w2, b2))
    ref_r = _reference(x_r, w2, b2)
    assert jnp.allclose(out_r, ref_r, atol=2e-3, rtol=2e-3)

    print("KERNEL_OK")
</pallas_src>

<mosaic_0001>
module attributes {stable_mosaic.version = 11 : i64} {
  func.func @_ln_packed_kernel(%arg0: i32, %arg1: memref<16x128xf32, #tpu.memory_space<vmem>>, %arg2: memref<1x128xf32, #tpu.memory_space<vmem>>, %arg3: memref<1x128xf32, #tpu.memory_space<vmem>>, %arg4: memref<128x128xbf16, #tpu.memory_space<vmem>>, %arg5: memref<16x128xf32, #tpu.memory_space<vmem>>) attributes {dimension_semantics = [#tpu.dimension_semantics<parallel>], iteration_bounds = array<i64: 2>, scalar_prefetch = 0 : i64, scratch_operands = 0 : i64, tpu.core_type = #tpu.core_type<tc>, window_params = [{transform_indices = @transform_0, window_bounds = array<i64: 16, 128>}, {pipeline_mode = #tpu.pipeline_mode<synchronous>, transform_indices = @transform_1, window_bounds = array<i64: 1, 128>}, {pipeline_mode = #tpu.pipeline_mode<synchronous>, transform_indices = @transform_2, window_bounds = array<i64: 1, 128>}, {pipeline_mode = #tpu.pipeline_mode<synchronous>, transform_indices = @transform_3, window_bounds = array<i64: 128, 128>}, {transform_indices = @transform_4, window_bounds = array<i64: 16, 128>}]} {
    %c0 = arith.constant 0 : index
    %c0_0 = arith.constant 0 : index
    %0 = vector.load %arg1[%c0, %c0_0] : memref<16x128xf32, #tpu.memory_space<vmem>>, vector<16x128xf32>
    %c0_1 = arith.constant 0 : index
    %c0_2 = arith.constant 0 : index
    %1 = vector.load %arg4[%c0_1, %c0_2] : memref<128x128xbf16, #tpu.memory_space<vmem>>, vector<128x128xbf16>
    %2 = arith.truncf %0 : vector<16x128xf32> to vector<16x128xbf16>
    %cst = arith.constant dense<0.000000e+00> : vector<16x128xf32>
    %3 = tpu.matmul %2, %1, %cst {dimension_numbers = #tpu.dot_dimension_numbers<[1], [0], [0], [1], [0, 0, 1, 1], [], []>} : vector<16x128xbf16>, vector<128x128xbf16>, vector<16x128xf32> -> vector<16x128xf32>
    %4 = arith.subf %0, %3 : vector<16x128xf32>
    %5 = arith.mulf %4, %4 : vector<16x128xf32>
    %6 = arith.truncf %5 : vector<16x128xf32> to vector<16x128xbf16>
    %cst_3 = arith.constant dense<0.000000e+00> : vector<16x128xf32>
    %7 = tpu.matmul %6, %1, %cst_3 {dimension_numbers = #tpu.dot_dimension_numbers<[1], [0], [0], [1], [0, 0, 1, 1], [], []>} : vector<16x128xbf16>, vector<128x128xbf16>, vector<16x128xf32> -> vector<16x128xf32>
    %cst_4 = arith.constant 9.99999974E-6 : f32
    %8 = vector.broadcast %cst_4 : f32 to vector<16x128xf32>
    %9 = arith.addf %7, %8 : vector<16x128xf32>
    %10 = math.rsqrt %9 : vector<16x128xf32>
    %11 = arith.mulf %4, %10 : vector<16x128xf32>
    %c0_5 = arith.constant 0 : index
    %c0_6 = arith.constant 0 : index
    %12 = vector.load %arg2[%c0_5, %c0_6] : memref<1x128xf32, #tpu.memory_space<vmem>>, vector<1x128xf32>
    %13 = vector.broadcast %12 : vector<1x128xf32> to vector<16x128xf32>
    %14 = arith.mulf %11, %13 : vector<16x128xf32>
    %c0_7 = arith.constant 0 : index
    %c0_8 = arith.constant 0 : index
    %15 = vector.load %arg3[%c0_7, %c0_8] : memref<1x128xf32, #tpu.memory_space<vmem>>, vector<1x128xf32>
    %16 = vector.broadcast %15 : vector<1x128xf32> to vector<16x128xf32>
    %17 = arith.addf %14, %16 : vector<16x128xf32>
    %c0_9 = arith.constant 0 : index
    %c0_10 = arith.constant 0 : index
    %18 = vector.load %arg5[%c0_9, %c0_10] : memref<16x128xf32, #tpu.memory_space<vmem>>, vector<16x128xf32>
    tpu.vector_store %arg5[%c0_9, %c0_10], %17 {strides = array<i32>} : memref<16x128xf32, #tpu.memory_space<vmem>>, vector<16x128xf32>,
    return
  }
  func.func @transform_0(%arg0: i32) -> (i32, i32) {
    %c0_i32 = arith.constant 0 : i32
    %c0_i32_0 = arith.constant 0 : i32
    return %arg0, %c0_i32 : i32, i32
  }
  func.func @transform_1(%arg0: i32) -> (i32, i32) {
    %c0_i32 = arith.constant 0 : i32
    %c0_i32_0 = arith.constant 0 : i32
    %c0_i32_1 = arith.constant 0 : i32
    return %c0_i32, %c0_i32_0 : i32, i32
  }
  func.func @transform_2(%arg0: i32) -> (i32, i32) {
    %c0_i32 = arith.constant 0 : i32
    %c0_i32_0 = arith.constant 0 : i32
    %c0_i32_1 = arith.constant 0 : i32
    return %c0_i32, %c0_i32_0 : i32, i32
  }
  func.func @transform_3(%arg0: i32) -> (i32, i32) {
    %c0_i32 = arith.constant 0 : i32
    %c0_i32_0 = arith.constant 0 : i32
    %c0_i32_1 = arith.constant 0 : i32
    return %c0_i32, %c0_i32_0 : i32, i32
  }
  func.func @transform_4(%arg0: i32) -> (i32, i32) {
    %c0_i32 = arith.constant 0 : i32
    %c0_i32_0 = arith.constant 0 : i32
    return %arg0, %c0_i32 : i32, i32
  }
}

</mosaic_0001>

<llo_original>
// kernel: tpu_custom_call.1
$region0: #{tpu_custom_call.1}
  #allocation0 [shape = 'u32[]', space=smem, size = 0x4, offset = 0x4, fixed_abs, tag = 'smem constant byte address 0x4 - core index']
  #allocation1 [shape = 'u32[72,128]{1,0:T(1,128)}', space=vmem, size = 0x9000, scoped, tag = 'internal scratch']
  %s0 = inlined_call_operand.hbm [shape: f32[32,128], index: 0, kind: input, shape index: {}]
  %s1 = inlined_call_operand.hbm [shape: f32[1,128], index: 1, kind: input, shape index: {}]
  %s2 = inlined_call_operand.vmem [shape: f32[1,128], index: 2, kind: input, shape index: {}]
  %s3 = inlined_call_operand.hbm [shape: bf16[128,128], index: 3, kind: input, shape index: {}]
  %s4 = inlined_call_operand.hbm [shape: f32[32,128], index: 4, kind: output, shape index: {}]
  %s5 = sld [smem:[#allocation0]]
  $region61: #{tpu_custom_call.1} parent=0
    _
  %s7 = ssub.s32 1, %s5
  %s8 = scalar_select 0, %s7, %s5
  $region1: #{tpu_custom_call.1} parent=0
    #allocation2 [shape = 'u8[16384]{0}', space=vmem, size = 0x4000, scoped, tag = 'input window, operand 0']
    #allocation3 [shape = 's32[2]{0}', space=sflag, size = 0x8, scoped, tag = 'scoped memory for tpu_custom_call.1']
    #allocation4 [shape = 's32[2]{0}', space=sflag, size = 0x8, scoped, tag = 'scoped memory for tpu_custom_call.1']
    #allocation5 [shape = 'u8[512]{0}', space=vmem, size = 0x400, scoped, tag = 'input window, operand 1, single buffered']
    #allocation6 [shape = 's32[1]{0}', space=sflag, size = 0x4, scoped, tag = 'scoped memory for tpu_custom_call.1']
    #allocation7 [shape = 'u8[32768]{0}', space=vmem, size = 0x8000, scoped, tag = 'input window, operand 3, single buffered']
    #allocation8 [shape = 'u8[16384]{0}', space=vmem, size = 0x4000, scoped, tag = 'output window, operand 0']
    %9 = vsyncpa [#allocation3], 0
    %s10 = scalar_lea.sflag [#allocation3], 1
    %11 = vsyncpa %s10, 0
    %12 = vsyncpa [#allocation6], 0
    %13 = vsyncpa [#allocation4], 0
    %s14 = scalar_lea.sflag [#allocation4], 1
    %15 = vsyncpa %s14, 0
    loop: start=0, step=1, limit=4
    $region2: #{tpu_custom_call.1} parent=1 // loop_pre_header
      _
    $region3: #{tpu_custom_call.1} parent=1 // loop_header
      %s17 = sphi 0, %s21
      %p18 = scmp.ge.s32.totalorder %s17, 4
      %s27 = sphi 0, %s29
      %s30 = sphi 0, %s27
      %s31 = sphi 0, %s30
      %s47 = sphi 0, %s31
      %s51 = sphi 0, %s51
      %s53 = sphi 0, %s51
      %s54 = sphi 0, %s53
      %s68 = sphi 0, %s54
      %s72 = sphi 0, %s72
      %s74 = sphi 0, %s72
      %s75 = sphi 0, %s74
      %s89 = sphi 0, %s75
      %s93 = sphi 0, %s93
      %s95 = sphi 0, %s93
      %s96 = sphi 0, %s95
      %s110 = sphi 0, %s96
      %s116 = sphi 0, %s118
      %s119 = sphi 0, %s116
      %s120 = sphi 0, %s119
      %s136 = sphi 0, %s120
    $region4: #{tpu_custom_call.1} parent=1 // loop_header_branch
      %20 = sbr.rel (%p18) target = $region8
    $region5: #{tpu_custom_call.1} parent=1 // loop_body
      %s22 = ssub.s32 %s17, 1
      %s23 = ssub.s32 %s17, 2
      %s24 = sadd.s32 %s17, 1
      %s25 = ssub.s32 %s17, %s24
      %p26 = scmp.eq.s32.totalorder %s25, 0
      %s28 = sadd.s32 %s27, 1
      %s29 = scalar_select %p26, %s27, %s28
      %p32 = pneg %p26
      %p33 = scmp.eq.s32.totalorder %s17, 1
      %p34 = por %p32, %p33
      %p35 = scmp.ne.s32.totalorder %s27, %s30
      %p36 = scmp.eq.s32.totalorder %s17, 0
      %p37 = por %p35, %p36
      %p38 = scmp.ne.s32.totalorder %s27, %s30
      %p39 = scmp.eq.s32.totalorder %s22, 1
      %p40 = por %p38, %p39
      %p41 = scmp.ne.s32.totalorder %s30, %s31
      %p42 = scmp.eq.s32.totalorder %s22, 0
      %p43 = por %p41, %p42
      %p44 = scmp.ne.s32.totalorder %s30, %s31
      %p45 = scmp.eq.s32.totalorder %s23, 1
      %p46 = por %p44, %p45
      %p48 = scmp.ne.s32.totalorder %s31, %s47
      %p49 = scmp.eq.s32.totalorder %s23, 0
      %p50 = por %p48, %p49
      %s52 = sadd.s32 %s51, 1
      %p55 = scmp.eq.s32.totalorder %s17, 1
      %p56 = scmp.ne.s32.totalorder %s51, %s53
      %p57 = scmp.eq.s32.totalorder %s17, 0
      %p58 = por %p56, %p57
      %p59 = scmp.ne.s32.totalorder %s51, %s53
      %p60 = scmp.eq.s32.totalorder %s22, 1
      %p61 = por %p59, %p60
      %p62 = scmp.ne.s32.totalorder %s53, %s54
      %p63 = scmp.eq.s32.totalorder %s22, 0
      %p64 = por %p62, %p63
      %p65 = scmp.ne.s32.totalorder %s53, %s54
      %p66 = scmp.eq.s32.totalorder %s23, 1
      %p67 = por %p65, %p66
      %p69 = scmp.ne.s32.totalorder %s54, %s68
      %p70 = scmp.eq.s32.totalorder %s23, 0
      %p71 = por %p69, %p70
      %s73 = sadd.s32 %s72, 1
      %p76 = scmp.eq.s32.totalorder %s17, 1
      %p77 = scmp.ne.s32.totalorder %s72, %s74
      %p78 = scmp.eq.s32.totalorder %s17, 0
      %p79 = por %p77, %p78
      %p80 = scmp.ne.s32.totalorder %s72, %s74
      %p81 = scmp.eq.s32.totalorder %s22, 1
      %p82 = por %p80, %p81
      %p83 = scmp.ne.s32.totalorder %s74, %s75
      %p84 = scmp.eq.s32.totalorder %s22, 0
      %p85 = por %p83, %p84
      %p86 = scmp.ne.s32.totalorder %s74, %s75
      %p87 = scmp.eq.s32.totalorder %s23, 1
      %p88 = por %p86, %p87
      %p90 = scmp.ne.s32.totalorder %s75, %s89
      %p91 = scmp.eq.s32.totalorder %s23, 0
      %p92 = por %p90, %p91
      %s94 = sadd.s32 %s93, 1
      %p97 = scmp.eq.s32.totalorder %s17, 1
      %p98 = scmp.ne.s32.totalorder %s93, %s95
      %p99 = scmp.eq.s32.totalorder %s17, 0
      %p100 = por %p98, %p99
      %p101 = scmp.ne.s32.totalorder %s93, %s95
      %p102 = scmp.eq.s32.totalorder %s22, 1
      %p103 = por %p101, %p102
      %p104 = scmp.ne.s32.totalorder %s95, %s96
      %p105 = scmp.eq.s32.totalorder %s22, 0
      %p106 = por %p104, %p105
      %p107 = scmp.ne.s32.totalorder %s95, %s96
      %p108 = scmp.eq.s32.totalorder %s23, 1
      %p109 = por %p107, %p108
      %p111 = scmp.ne.s32.totalorder %s96, %s110
      %p112 = scmp.eq.s32.totalorder %s23, 0
      %p113 = por %p111, %p112
      %s114 = ssub.s32 %s17, %s24
      %p115 = scmp.eq.s32.totalorder %s114, 0
      %s117 = sadd.s32 %s116, 1
      %s118 = scalar_select %p115, %s116, %s117
      %p121 = pneg %p115
      %p122 = scmp.eq.s32.totalorder %s17, 1
      %p123 = por %p121, %p122
      %p124 = scmp.ne.s32.totalorder %s116, %s119
      %p125 = scmp.eq.s32.totalorder %s17, 0
      %p126 = por %p124, %p125
      %p127 = scmp.ne.s32.totalorder %s116, %s119
      %p128 = scmp.eq.s32.totalorder %s22, 1
      %p129 = por %p127, %p128
      %p130 = scmp.ne.s32.totalorder %s119, %s120
      %p131 = scmp.eq.s32.totalorder %s22, 0
      %p132 = por %p130, %p131
      %p133 = scmp.ne.s32.totalorder %s119, %s120
      %p134 = scmp.eq.s32.totalorder %s23, 1
      %p135 = por %p133, %p134
      %p137 = scmp.ne.s32.totalorder %s120, %s136
      %p138 = scmp.eq.s32.totalorder %s23, 0
      %p139 = por %p137, %p138
      %p140 = scmp.le.s32.totalorder 1, %s17
      %p141 = scmp.lt.s32.totalorder %s17, 3
      %p142 = pnand %p140, %p141
      %p143 = pneg %p142
      // Predicated region
      $region9: #{tpu_custom_call.1} parent=5 // pred_check
        _
      $region10: #{tpu_custom_call.1} parent=5 // pred_check_branch
        %145 = sbr.rel (%p142) target = $region12
      $region11: #{tpu_custom_call.1} parent=5 // pred_region
        %s146 = ssub.s32 %s17, 1
        // Predicated region
        $region13: #{tpu_custom_call.1} parent=11 // pred_check
          %p147 = pneg %p64
        $region14: #{tpu_custom_call.1} parent=11 // pred_check_branch
          %149 = sbr.rel (%p147) target = $region16
        $region15: #{tpu_custom_call.1} parent=11 // pred_region
          %151 = vsyncadd [#allocation6], 0
          %s153 = sshll.u32 %s1, 4
          %s154 = int_to_ptr.hbm [resolvable:$true] %s153
          %s155 = sshll.u32 [#allocation5], 4
          %s156 = int_to_ptr.vmem [resolvable:$true] %s155
          %158 = dma.hbm_to_vmem [thread:$0]  %s154, 16, %s156, [#allocation6]
        $region16: #{tpu_custom_call.1} parent=11 // pred_fallthru
          _
        // Predicated region
        $region17: #{tpu_custom_call.1} parent=11 // pred_check
          %p159 = pneg %p85
        $region18: #{tpu_custom_call.1} parent=11 // pred_check_branch
          %161 = sbr.rel (%p159) target = $region20
        $region19: #{tpu_custom_call.1} parent=11 // pred_region
          _
        $region20: #{tpu_custom_call.1} parent=11 // pred_fallthru
          _
        // Predicated region
        $region21: #{tpu_custom_call.1} parent=11 // pred_check
          %p162 = pneg %p106
        $region22: #{tpu_custom_call.1} parent=11 // pred_check_branch
          %164 = sbr.rel (%p162) target = $region24
        $region23: #{tpu_custom_call.1} parent=11 // pred_region
          %166 = vsyncadd [#allocation6], 0
          %s167 = sshll.u32 %s3, 4
          %s168 = int_to_ptr.hbm [resolvable:$true] %s167
          %s169 = sshll.u32 [#allocation7], 4
          %s170 = int_to_ptr.vmem [resolvable:$true] %s169
          %175 = dma.hbm_to_vmem [thread:$0]  %s168, 1024, %s170, [#allocation6], 64, 64, 4
        $region24: #{tpu_custom_call.1} parent=11 // pred_fallthru
          _
      $region12: #{tpu_custom_call.1} parent=5 // pred_fallthru
        _
      %p176 = scmp.lt.s32.totalorder %s17, 2
      // Predicated region
      $region25: #{tpu_custom_call.1} parent=5 // pred_check
        %p177 = pneg %p176
      $region26: #{tpu_custom_call.1} parent=5 // pred_check_branch
        %179 = sbr.rel (%p177) target = $region28
      $region27: #{tpu_custom_call.1} parent=5 // pred_region
        // Predicated region
        $region29: #{tpu_custom_call.1} parent=27 // pred_check
          %p180 = pneg %p37
        $region30: #{tpu_custom_call.1} parent=27 // pred_check_branch
          %182 = sbr.rel (%p180) target = $region32
        $region31: #{tpu_custom_call.1} parent=27 // pred_region
          %s183 = sand.u32 %s27, 1
          %s184 = scalar_lea.sflag [#allocation3], %s183
          %s185 = sand.u32 %s27, 1
          %s186 = smul.addr %s185, 16
          %s187 = scalar_lea.vmem [#allocation2], %s186
          %s188 = smul.u32 2, %s17
          %190 = vsyncadd %s184, 0
          %s191 = smul.addr %s188, 8
          %s192 = scalar_lea.hbm %s0, %s191
          %s193 = sshll.u32 %s192, 4
          %s194 = int_to_ptr.hbm [resolvable:$true] %s193
          %s195 = sshll.u32 %s187, 4
          %s196 = int_to_ptr.vmem [resolvable:$true] %s195
          %201 = dma.hbm_to_vmem [thread:$0]  %s194, 256, %s196, %s184, 128, 128, 8
        $region32: #{tpu_custom_call.1} parent=27 // pred_fallthru
          _
      $region28: #{tpu_custom_call.1} parent=5 // pred_fallthru
        _
      %p202 = scmp.le.s32.totalorder 1, %s17
      %p203 = scmp.lt.s32.totalorder %s17, 3
      %p204 = pnand %p202, %p203
      %p205 = pneg %p204
      // Predicated region
      $region33: #{tpu_custom_call.1} parent=5 // pred_check
        _
      $region34: #{tpu_custom_call.1} parent=5 // pred_check_branch
        %207 = sbr.rel (%p204) target = $region36
      $region35: #{tpu_custom_call.1} parent=5 // pred_region
        %s208 = ssub.s32 %s17, 1
        %s209 = sand.u32 %s30, 1
        %s210 = scalar_lea.sflag [#allocation3], %s209
        %s211 = sand.u32 %s30, 1
        %s212 = smul.addr %s211, 16
        %s213 = scalar_lea.vmem [#allocation2], %s212
        // Predicated region
        $region37: #{tpu_custom_call.1} parent=35 // pred_check
          %p214 = pneg %p43
        $region38: #{tpu_custom_call.1} parent=35 // pred_check_branch
          %216 = sbr.rel (%p214) target = $region40
        $region39: #{tpu_custom_call.1} parent=35 // pred_region
          %218 = dma.done %s210, 256
        $region40: #{tpu_custom_call.1} parent=35 // pred_fallthru
          _
        // Predicated region
        $region41: #{tpu_custom_call.1} parent=35 // pred_check
          %p219 = pneg %p64
        $region42: #{tpu_custom_call.1} parent=35 // pred_check_branch
          %221 = sbr.rel (%p219) target = $region44
        $region43: #{tpu_custom_call.1} parent=35 // pred_region
          %223 = dma.done [#allocation6], 16
        $region44: #{tpu_custom_call.1} parent=35 // pred_fallthru
          _
        // Predicated region
        $region45: #{tpu_custom_call.1} parent=35 // pred_check
          %p224 = pneg %p106
        $region46: #{tpu_custom_call.1} parent=35 // pred_check_branch
          %226 = sbr.rel (%p224) target = $region48
        $region47: #{tpu_custom_call.1} parent=35 // pred_region
          %228 = dma.done [#allocation6], 1024
        $region48: #{tpu_custom_call.1} parent=35 // pred_fallthru
          _
        %s229 = sand.u32 %s30, 1
        %s230 = scalar_lea.sflag [#allocation3], %s229
        %s231 = sand.u32 %s30, 1
        %s232 = smul.addr %s231, 16
        %s233 = scalar_lea.vmem [#allocation2], %s232
        %p234 = pneg %p43
        %p235 = pneg %p40
        %p236 = pneg %p64
        %p237 = pneg %p61
        %p238 = pneg %p85
        %p239 = pneg %p82
        %p240 = pneg %p106
        %p241 = pneg %p103
        %p242 = pneg %p132
        %p243 = pneg %p129
        %s244 = sand.u32 %s119, 1
        %s245 = scalar_lea.sflag [#allocation4], %s244
        %s246 = sand.u32 %s119, 1
        %s247 = smul.addr %s246, 16
        %s248 = scalar_lea.vmem [#allocation8], %s247
        %s249 = smul.u32 2, %s22
        %s250 = smul.u32 2, %s22
        %v251 = vld [vmem:[%s213] sm:$0xff]
        %v252 = vld [vmem:[%s213 + $0x8] sm:$0xff]
        %v253 = vld [vmem:[#allocation7] sm:$0xf]
        %v254 = vld [vmem:[#allocation7 + $0x4] sm:$0xf]
        %v255 = vld [vmem:[#allocation7 + $0x8] sm:$0xf]
        %v256 = vld [vmem:[#allocation7 + $0xc] sm:$0xf]
        %v257 = vld [vmem:[#allocation7 + $0x10] sm:$0xf]
        %v258 = vld [vmem:[#allocation7 + $0x14] sm:$0xf]
        %v259 = vld [vmem:[#allocation7 + $0x18] sm:$0xf]
        %v260 = vld [vmem:[#allocation7 + $0x1c] sm:$0xf]
        %v261 = vld [vmem:[#allocation7 + $0x20] sm:$0xf]
        %v262 = vld [vmem:[#allocation7 + $0x24] sm:$0xf]
        %v263 = vld [vmem:[#allocation7 + $0x28] sm:$0xf]
        %v264 = vld [vmem:[#allocation7 + $0x2c] sm:$0xf]
        %v265 = vld [vmem:[#allocation7 + $0x30] sm:$0xf]
        %v266 = vld [vmem:[#allocation7 + $0x34] sm:$0xf]
        %v267 = vld [vmem:[#allocation7 + $0x38] sm:$0xf]
        %v268 = vld [vmem:[#allocation7 + $0x3c] sm:$0xf]
        %v269 = vpack.c.bf16 %v252, %v251
        %v286 = vunpack.c.l.b16 %v253
        %v287 = vunpack.c.l.b16 %v254
        %v288 = vunpack.c.l.b16 %v255
        %v289 = vunpack.c.l.b16 %v256
        %v290 = vunpack.c.l.b16 %v257
        %v291 = vunpack.c.l.b16 %v258
        %v292 = vunpack.c.l.b16 %v259
        %v293 = vunpack.c.l.b16 %v260
        %v294 = vunpack.c.l.b16 %v261
        %v295 = vunpack.c.l.b16 %v262
        %v296 = vunpack.c.l.b16 %v263
        %v297 = vunpack.c.l.b16 %v264
        %v298 = vunpack.c.l.b16 %v265
        %v299 = vunpack.c.l.b16 %v266
        %v300 = vunpack.c.l.b16 %v267
        %v301 = vunpack.c.l.b16 %v268
        %v302 = vpack.c.b16 %v287, %v286
        %v303 = vpack.c.b16 %v289, %v288
        %v304 = vpack.c.b16 %v291, %v290
        %v305 = vpack.c.b16 %v293, %v292
        %v306 = vpack.c.b16 %v295, %v294
        %v307 = vpack.c.b16 %v297, %v296
        %v308 = vpack.c.b16 %v299, %v298
        %v309 = vpack.c.b16 %v301, %v300
        %318 = vmatpush.bf16.msra.mxu0 %v309
        %319 = vmatpush.bf16.msra.mxu0 %v308
        %320 = vmatpush.bf16.msra.mxu0 %v307
        %321 = vmatpush.bf16.msra.mxu0 %v306
        %322 = vmatpush.bf16.msra.mxu0 %v305
        %323 = vmatpush.bf16.msra.mxu0 %v304
        %324 = vmatpush.bf16.msra.mxu0 %v303
        %325 = vmatpush.bf16.msra.mxu0 %v302
        %326 = vmatmul.bf16.gmra.mxu0 %v269
        %v327 = vpop.f32.mrf.mxu0
        %v328 = vadd.f32 0.0, %v327
        %v329 = vpop.f32.mrf.mxu0
        %v330 = vadd.f32 0.0, %v329
        %331 = vdwg.mxu0
        %v332 = vsub.f32 %v251, %v328
        %v333 = vsub.f32 %v252, %v330
        %v334 = vmul.f32 %v332, %v332
        %v335 = vmul.f32 %v333, %v333
        %v336 = vpack.c.bf16 %v335, %v334
        %337 = vmatpush.bf16.msra.mxu0 %v309
        %338 = vmatpush.bf16.msra.mxu0 %v308
        %339 = vmatpush.bf16.msra.mxu0 %v307
        %340 = vmatpush.bf16.msra.mxu0 %v306
        %341 = vmatpush.bf16.msra.mxu0 %v305
        %342 = vmatpush.bf16.msra.mxu0 %v304
        %343 = vmatpush.bf16.msra.mxu0 %v303
        %344 = vmatpush.bf16.msra.mxu0 %v302
        %345 = vmatmul.bf16.gmra.mxu0 %v336
        %v346 = vpop.f32.mrf.mxu0
        %v347 = vadd.f32 1e-05, %v346
        %v348 = vpop.f32.mrf.mxu0
        %v349 = vadd.f32 1e-05, %v348
        %350 = vdwg.mxu0
        %v351 = vrsqrt.pop %v347
        %v352 = vmul.f32 %v351, %v347
        %v353 = vmul.f32 %v352, %v351
        %v354 = vmul.f32 0.5, %v353
        %v355 = vsub.f32 1.5, %v354
        %v356 = vmul.f32 %v351, %v355
        %vm357 = vweird.f32 %v347
        %vm358 = vweird.f32 %v351
        %vm359 = vmor %vm357, %vm358
        %v360 = vsel %vm359, %v351, %v356
        %v361 = vrsqrt.pop %v349
        %v362 = vmul.f32 %v361, %v349
        %v363 = vmul.f32 %v362, %v361
        %v364 = vmul.f32 0.5, %v363
        %v365 = vsub.f32 1.5, %v364
        %v366 = vmul.f32 %v361, %v365
        %vm367 = vweird.f32 %v349
        %vm368 = vweird.f32 %v361
        %vm369 = vmor %vm367, %vm368
        %v370 = vsel %vm369, %v361, %v366
        %v371 = vmul.f32 %v332, %v360
        %v372 = vmul.f32 %v333, %v370
        %v373 = vld [vmem:[#allocation5] sm:$0x1]
        %v375 = vperm.slane %v373, 0
        %v377 = vmul.f32 %v371, %v375
        %v378 = vmul.f32 %v372, %v375
        %v379 = vld [vmem:[%s2] sm:$0x1]
        %v381 = vperm.slane %v379, 0
        %v383 = vadd.f32 %v377, %v381
        %v384 = vadd.f32 %v378, %v381
        %385 = vst [vmem:[%s248] sm:$0xff] %v383
        %386 = vst [vmem:[%s248 + $0x8] sm:$0xff] %v384
        %s387 = sand.u32 %s119, 1
        %s388 = scalar_lea.sflag [#allocation4], %s387
        %s389 = sand.u32 %s119, 1
        %s390 = smul.addr %s389, 16
        %s391 = scalar_lea.vmem [#allocation8], %s390
        // Predicated region
        $region49: #{tpu_custom_call.1} parent=35 // pred_check
          %p392 = pneg %p129
        $region50: #{tpu_custom_call.1} parent=35 // pred_check_branch
          %394 = sbr.rel (%p392) target = $region52
        $region51: #{tpu_custom_call.1} parent=35 // pred_region
          %s395 = smul.u32 2, %s22
          %397 = vsyncadd %s388, 0
          %s398 = smul.addr %s395, 8
          %s399 = scalar_lea.hbm %s4, %s398
          %s400 = sshll.u32 %s391, 4
          %s401 = int_to_ptr.vmem [resolvable:$true] %s400
          %s402 = sshll.u32 %s399, 4
          %s403 = int_to_ptr.hbm [resolvable:$true] %s402
          %408 = dma.vmem_to_hbm [thread:$0]  %s401, 256, %s403, %s388, 128, 128, 8
        $region52: #{tpu_custom_call.1} parent=35 // pred_fallthru
          _
      $region36: #{tpu_custom_call.1} parent=5 // pred_fallthru
        _
      %p409 = scmp.le.s32.totalorder 2, %s17
      // Predicated region
      $region53: #{tpu_custom_call.1} parent=5 // pred_check
        %p410 = pneg %p409
      $region54: #{tpu_custom_call.1} parent=5 // pred_check_branch
        %412 = sbr.rel (%p410) target = $region56
      $region55: #{tpu_custom_call.1} parent=5 // pred_region
        %s413 = ssub.s32 %s17, 2
        // Predicated region
        $region57: #{tpu_custom_call.1} parent=55 // pred_check
          %p414 = pneg %p135
        $region58: #{tpu_custom_call.1} parent=55 // pred_check_branch
          %416 = sbr.rel (%p414) target = $region60
        $region59: #{tpu_custom_call.1} parent=55 // pred_region
          %s417 = sand.u32 %s120, 1
          %s418 = scalar_lea.sflag [#allocation4], %s417
          %s419 = sand.u32 %s120, 1
          %s420 = smul.addr %s419, 16
          %s421 = scalar_lea.vmem [#allocation8], %s420
          %423 = dma.done %s418, 256
        $region60: #{tpu_custom_call.1} parent=55 // pred_fallthru
          _
      $region56: #{tpu_custom_call.1} parent=5 // pred_fallthru
        _
    $region6: #{tpu_custom_call.1} parent=1 // loop_footer
      %s21 = sadd.s32 1, %s17
    $region7: #{tpu_custom_call.1} parent=1 // loop_footer_branch
      %16 = sbr.rel target = $region3
    $region8: #{tpu_custom_call.1} parent=1 // loop_exit
      _
    %424 = vsyncpa [#allocation3], 1
    %s425 = scalar_lea.sflag [#allocation3], 1
    %426 = vsyncpa %s425, 1
    %427 = vsyncpa [#allocation6], 1
    %428 = vsyncpa [#allocation4], 1
    %s429 = scalar_lea.sflag [#allocation4], 1
    %430 = vsyncpa %s429, 1

</llo_original>
